<compile_context>
chip_gen: v5e
topology: v5e:2x2
jax: 0.10.0
libtpu: 0.0.40
codegen_flags: <defaults>
</compile_context>

<pallas_src>
import math

import jax
import jax.numpy as jnp
from jax.experimental import pallas as pl
from jax.experimental.pallas import tpu as pltpu

LANE = 128      # vreg lane width
SUBLANE = 8     # f32 sublane count


def _round_up(n, m):
    return (n + m - 1) // m * m


def _cdiv(a, b):
    return -(-a // b)


def qnet_kernel(x_ref, w1_ref, b1_ref, w2_ref, b2_ref, o_ref):
    # x_ref:  (TB, F)   f32   obs tile (pipelined over the batch grid axis)
    # w1_ref: (F, Hp)   f32,  b1_ref: (1, Hp) f32   (VMEM-resident)
    # w2_ref: (Hp, A)   f32,  b2_ref: (1, A)  f32   (VMEM-resident)
    # o_ref:  (TB, A)   f32   q-values (unpadded action dim)
    h = jnp.dot(x_ref[...], w1_ref[...], preferred_element_type=jnp.float32)
    h = jnp.maximum(h + b1_ref[...], 0.0)                       # bias + ReLU (VPU)
    q = jnp.dot(h, w2_ref[...], preferred_element_type=jnp.float32) + b2_ref[...]
    o_ref[...] = q.astype(o_ref.dtype)


def pack_params(w1, b1, w2, b2):
    """Pad the hidden dim to a lane multiple ONCE, outside the per-call path.

    w1: (F, H), b1: (H,) or (1, H), w2: (H, A), b2: (A,) or (1, A).
    Zero-padding of the hidden dim is exact (zero cols/bias -> ReLU(0)=0,
    matched zero rows in w2).
    """
    F, H = w1.shape
    assert w2.shape[0] == H
    A = w2.shape[1]
    Hp = _round_up(H, LANE)
    w1_p = jnp.pad(w1.astype(jnp.float32), ((0, 0), (0, Hp - H)))
    b1_p = jnp.pad(jnp.asarray(b1, jnp.float32).reshape(1, H), ((0, 0), (0, Hp - H)))
    w2_p = jnp.pad(w2.astype(jnp.float32), ((0, Hp - H), (0, 0)))
    b2_p = jnp.asarray(b2, jnp.float32).reshape(1, A)
    return w1_p, b1_p, w2_p, b2_p


def qnetwork_forward(obs, w1_p, b1_p, w2_p, b2_p, *, max_tile_batch=2048):
    """obs: (batch, *obs_size) -> (batch, action_size) float32.

    Matches torch: relu(obs.view(B, -1) @ W1 + b1) @ W2 + b2 with weights
    stored (in, out). Params must come from pack_params().
    """
    batch = obs.shape[0]
    x = obs.reshape(batch, -1).astype(jnp.float32)   # flatten like obs.view(B, -1)
    F = x.shape[1]
    Hp = w1_p.shape[1]
    A = w2_p.shape[1]
    assert w1_p.shape[0] == F, "flattened obs dim must match packed w1"

    # Adaptive batch tiling:
    #  * large tiles (up to max_tile_batch rows) amortize per-grid-step overhead
    #  * batches above the target keep >=2 tiles (both v7x TensorCores get work)
    #  * tile size derived from the actual batch -> no nearly-empty last tile
    if batch > max_tile_batch:
        n_tiles = max(2, _cdiv(batch, max_tile_batch))
    else:
        n_tiles = 1
    TB = _round_up(_cdiv(batch, n_tiles), SUBLANE)
    Bp = _round_up(batch, TB)

    if Bp != batch:
        x = jnp.pad(x, ((0, Bp - batch), (0, 0)))    # padded rows sliced off below

    out = pl.pallas_call(
        qnet_kernel,
        out_shape=jax.ShapeDtypeStruct((Bp, A), jnp.float32),
        grid_spec=pl.GridSpec(
            grid=(Bp // TB,),
            in_specs=[
                pl.BlockSpec((TB, F), lambda i: (i, 0)),    # obs tile, pipelined
                pl.BlockSpec((F, Hp), lambda i: (0, 0)),    # weights stay resident
                pl.BlockSpec((1, Hp), lambda i: (0, 0)),
                pl.BlockSpec((Hp, A), lambda i: (0, 0)),
                pl.BlockSpec((1, A), lambda i: (0, 0)),
            ],
            out_specs=pl.BlockSpec((TB, A), lambda i: (i, 0)),  # full (unpadded) A
        ),
        compiler_params=pltpu.CompilerParams(
            dimension_semantics=("parallel",),              # shard batch tiles across TCs
        ),
    )(x, w1_p, b1_p, w2_p, b2_p)

    return out[:batch] if Bp != batch else out


def init_params(key, obs_flat, hidden, action):
    # Deterministic synthetic init (uniform like torch.nn.Linear default range).
    k1, k2, k3, k4 = jax.random.split(key, 4)
    lim1 = 1.0 / math.sqrt(obs_flat)
    lim2 = 1.0 / math.sqrt(hidden)
    w1 = jax.random.uniform(k1, (obs_flat, hidden), jnp.float32, -lim1, lim1)
    b1 = jax.random.uniform(k2, (1, hidden), jnp.float32, -lim1, lim1)
    w2 = jax.random.uniform(k3, (hidden, action), jnp.float32, -lim2, lim2)
    b2 = jax.random.uniform(k4, (1, action), jnp.float32, -lim2, lim2)
    return w1, b1, w2, b2


if __name__ == "__main__":
    # Small shapes consistent with the module: obs_size=(4, 8) -> flat 32,
    # hidden_size=100 (module default), action_size=8.
    batch, obs_size, hidden, action = 8, (4, 8), 100, 8
    obs_flat = math.prod(obs_size)

    key = jax.random.PRNGKey(0)
    k_obs, k_params = jax.random.split(key)
    obs = jax.random.normal(k_obs, (batch, *obs_size), jnp.float32)
    w1, b1, w2, b2 = init_params(k_params, obs_flat, hidden, action)

    # Pack (pad + cast) weights once, outside the per-call jitted path.
    packed = pack_params(w1, b1, w2, b2)

    fwd = jax.jit(qnetwork_forward, static_argnames=("max_tile_batch",))
    q = fwd(obs, *packed)
    q = jax.block_until_ready(q)
    assert q.shape == (batch, action)

    # Reference: full f32 forward (kernel is f32 end-to-end now -> tight match).
    x = obs.reshape(batch, -1)
    ref = jnp.maximum(x @ w1 + b1, 0.0) @ w2 + b2
    assert jnp.allclose(q, ref, atol=2e-3, rtol=2e-3), (
        float(jnp.max(jnp.abs(q - ref))))

    # Second check: batch that is not a sublane multiple (exercises row padding
    # and the [:batch] slice), reusing the same packed params.
    batch2 = 13
    obs2 = jax.random.normal(jax.random.PRNGKey(1), (batch2, *obs_size), jnp.float32)
    q2 = jax.block_until_ready(fwd(obs2, *packed))
    x2 = obs2.reshape(batch2, -1)
    ref2 = jnp.maximum(x2 @ w1 + b1, 0.0) @ w2 + b2
    assert q2.shape == (batch2, action)
    assert jnp.allclose(q2, ref2, atol=2e-3, rtol=2e-3)

    print("KERNEL_OK")
</pallas_src>

<mosaic_0001>
module attributes {stable_mosaic.version = 11 : i64} {
  func.func @qnet_kernel(%arg0: i32, %arg1: memref<8x32xf32, #tpu.memory_space<vmem>>, %arg2: memref<32x128xf32, #tpu.memory_space<vmem>>, %arg3: memref<1x128xf32, #tpu.memory_space<vmem>>, %arg4: memref<128x8xf32, #tpu.memory_space<vmem>>, %arg5: memref<1x8xf32, #tpu.memory_space<vmem>>, %arg6: memref<8x8xf32, #tpu.memory_space<vmem>>) attributes {dimension_semantics = [#tpu.dimension_semantics<parallel>], iteration_bounds = array<i64: 1>, scalar_prefetch = 0 : i64, scratch_operands = 0 : i64, tpu.core_type = #tpu.core_type<tc>, window_params = [{transform_indices = @transform_0, window_bounds = array<i64: 8, 32>}, {pipeline_mode = #tpu.pipeline_mode<synchronous>, transform_indices = @transform_1, window_bounds = array<i64: 32, 128>}, {pipeline_mode = #tpu.pipeline_mode<synchronous>, transform_indices = @transform_2, window_bounds = array<i64: 1, 128>}, {pipeline_mode = #tpu.pipeline_mode<synchronous>, transform_indices = @transform_3, window_bounds = array<i64: 128, 8>}, {pipeline_mode = #tpu.pipeline_mode<synchronous>, transform_indices = @transform_4, window_bounds = array<i64: 1, 8>}, {transform_indices = @transform_5, window_bounds = array<i64: 8, 8>}]} {
    %c0 = arith.constant 0 : index
    %c0_0 = arith.constant 0 : index
    %0 = vector.load %arg1[%c0, %c0_0] : memref<8x32xf32, #tpu.memory_space<vmem>>, vector<8x32xf32>
    %c0_1 = arith.constant 0 : index
    %c0_2 = arith.constant 0 : index
    %1 = vector.load %arg2[%c0_1, %c0_2] : memref<32x128xf32, #tpu.memory_space<vmem>>, vector<32x128xf32>
    %cst = arith.constant dense<0.000000e+00> : vector<8x128xf32>
    %2 = tpu.matmul %0, %1, %cst {dimension_numbers = #tpu.dot_dimension_numbers<[1], [0], [0], [1], [0, 0, 1, 1], [], []>} : vector<8x32xf32>, vector<32x128xf32>, vector<8x128xf32> -> vector<8x128xf32>
    %c0_3 = arith.constant 0 : index
    %c0_4 = arith.constant 0 : index
    %3 = vector.load %arg3[%c0_3, %c0_4] : memref<1x128xf32, #tpu.memory_space<vmem>>, vector<1x128xf32>
    %4 = vector.broadcast %3 : vector<1x128xf32> to vector<8x128xf32>
    %5 = arith.addf %2, %4 : vector<8x128xf32>
    %cst_5 = arith.constant 0.000000e+00 : f32
    %6 = vector.broadcast %cst_5 : f32 to vector<8x128xf32>
    %7 = arith.maximumf %5, %6 : vector<8x128xf32>
    %c0_6 = arith.constant 0 : index
    %c0_7 = arith.constant 0 : index
    %8 = vector.load %arg4[%c0_6, %c0_7] : memref<128x8xf32, #tpu.memory_space<vmem>>, vector<128x8xf32>
    %cst_8 = arith.constant dense<0.000000e+00> : vector<8x8xf32>
    %9 = tpu.matmul %7, %8, %cst_8 {dimension_numbers = #tpu.dot_dimension_numbers<[1], [0], [0], [1], [0, 0, 1, 1], [], []>} : vector<8x128xf32>, vector<128x8xf32>, vector<8x8xf32> -> vector<8x8xf32>
    %c0_9 = arith.constant 0 : index
    %c0_10 = arith.constant 0 : index
    %10 = vector.load %arg5[%c0_9, %c0_10] : memref<1x8xf32, #tpu.memory_space<vmem>>, vector<1x8xf32>
    %11 = vector.broadcast %10 : vector<1x8xf32> to vector<8x8xf32>
    %12 = arith.addf %9, %11 : vector<8x8xf32>
    %c0_11 = arith.constant 0 : index
    %c0_12 = arith.constant 0 : index
    %13 = vector.load %arg6[%c0_11, %c0_12] : memref<8x8xf32, #tpu.memory_space<vmem>>, vector<8x8xf32>
    tpu.vector_store %arg6[%c0_11, %c0_12], %12 {strides = array<i32>} : memref<8x8xf32, #tpu.memory_space<vmem>>, vector<8x8xf32>,
    return
  }
  func.func @transform_0(%arg0: i32) -> (i32, i32) {
    %c0_i32 = arith.constant 0 : i32
    %c0_i32_0 = arith.constant 0 : i32
    return %arg0, %c0_i32 : i32, i32
  }
  func.func @transform_1(%arg0: i32) -> (i32, i32) {
    %c0_i32 = arith.constant 0 : i32
    %c0_i32_0 = arith.constant 0 : i32
    %c0_i32_1 = arith.constant 0 : i32
    return %c0_i32, %c0_i32_0 : i32, i32
  }
  func.func @transform_2(%arg0: i32) -> (i32, i32) {
    %c0_i32 = arith.constant 0 : i32
    %c0_i32_0 = arith.constant 0 : i32
    %c0_i32_1 = arith.constant 0 : i32
    return %c0_i32, %c0_i32_0 : i32, i32
  }
  func.func @transform_3(%arg0: i32) -> (i32, i32) {
    %c0_i32 = arith.constant 0 : i32
    %c0_i32_0 = arith.constant 0 : i32
    %c0_i32_1 = arith.constant 0 : i32
    return %c0_i32, %c0_i32_0 : i32, i32
  }
  func.func @transform_4(%arg0: i32) -> (i32, i32) {
    %c0_i32 = arith.constant 0 : i32
    %c0_i32_0 = arith.constant 0 : i32
    %c0_i32_1 = arith.constant 0 : i32
    return %c0_i32, %c0_i32_0 : i32, i32
  }
  func.func @transform_5(%arg0: i32) -> (i32, i32) {
    %c0_i32 = arith.constant 0 : i32
    %c0_i32_0 = arith.constant 0 : i32
    return %arg0, %c0_i32 : i32, i32
  }
}

</mosaic_0001>

<llo_original>
// kernel: qnetwork_forward.1
$region0: #{qnetwork_forward.1}
  #allocation0 [shape = 'u32[]', space=smem, size = 0x4, offset = 0x4, fixed_abs, tag = 'smem constant byte address 0x4 - core index']
  #allocation1 [shape = 'u32[72,128]{1,0:T(1,128)}', space=vmem, size = 0x9000, scoped, tag = 'internal scratch']
  %s0 = inlined_call_operand.vmem [shape: f32[8,32], index: 0, kind: input, shape index: {}]
  %s1 = inlined_call_operand.vmem [shape: f32[32,128], index: 1, kind: input, shape index: {}]
  %s2 = inlined_call_operand.vmem [shape: f32[1,128], index: 2, kind: input, shape index: {}]
  %s3 = inlined_call_operand.vmem [shape: f32[128,8], index: 3, kind: input, shape index: {}]
  %s4 = inlined_call_operand.vmem [shape: f32[1,8], index: 4, kind: input, shape index: {}]
  %s5 = inlined_call_operand.hbm [shape: f32[8,8], index: 5, kind: output, shape index: {}]
  %s6 = sld [smem:[#allocation0]]
  $region30: #{qnetwork_forward.1} parent=0
    _
  %s8 = ssub.s32 1, %s6
  %s9 = scalar_select 0, %s8, %s6
  $region1: #{qnetwork_forward.1} parent=0
    #allocation2 [shape = 'u8[4096]{0}', space=vmem, size = 0x1000, scoped, tag = 'output window, operand 0, single buffered']
    #allocation3 [shape = 's32[1]{0}', space=sflag, size = 0x4, scoped, tag = 'scoped memory for qnetwork_forward.1']
    %10 = vsyncpa [#allocation3], 0
    // Predicated region
    $region2: #{qnetwork_forward.1} parent=1 // pred_check
      _
    $region3: #{qnetwork_forward.1} parent=1 // pred_check_branch
      %12 = sbr.rel (0) target = $region5
    $region4: #{qnetwork_forward.1} parent=1 // pred_region
      _
    $region5: #{qnetwork_forward.1} parent=1 // pred_fallthru
      _
    // Predicated region
    $region6: #{qnetwork_forward.1} parent=1 // pred_check
      _
    $region7: #{qnetwork_forward.1} parent=1 // pred_check_branch
      %14 = sbr.rel (0) target = $region9
    $region8: #{qnetwork_forward.1} parent=1 // pred_region
      _
    $region9: #{qnetwork_forward.1} parent=1 // pred_fallthru
      _
    // Predicated region
    $region10: #{qnetwork_forward.1} parent=1 // pred_check
      _
    $region11: #{qnetwork_forward.1} parent=1 // pred_check_branch
      %16 = sbr.rel (0) target = $region13
    $region12: #{qnetwork_forward.1} parent=1 // pred_region
      _
    $region13: #{qnetwork_forward.1} parent=1 // pred_fallthru
      _
    // Predicated region
    $region14: #{qnetwork_forward.1} parent=1 // pred_check
      _
    $region15: #{qnetwork_forward.1} parent=1 // pred_check_branch
      %18 = sbr.rel (0) target = $region17
    $region16: #{qnetwork_forward.1} parent=1 // pred_region
      _
    $region17: #{qnetwork_forward.1} parent=1 // pred_fallthru
      _
    // Predicated region
    $region18: #{qnetwork_forward.1} parent=1 // pred_check
      _
    $region19: #{qnetwork_forward.1} parent=1 // pred_check_branch
      %20 = sbr.rel (0) target = $region21
    $region20: #{qnetwork_forward.1} parent=1 // pred_region
      _
    $region21: #{qnetwork_forward.1} parent=1 // pred_fallthru
      _
    %v21 = vld [vmem:[%s0] sm:$0xff]
    %v22 = vld [vmem:[%s1] sm:$0xff]
    %v23 = vld [vmem:[%s1 + $0x8] sm:$0xff]
    %v24 = vld [vmem:[%s1 + $0x10] sm:$0xff]
    %v25 = vld [vmem:[%s1 + $0x18] sm:$0xff]
    %v26 = vld [vmem:[%s2] sm:$0x1]
    %v28 = vperm.slane %v26, 0
    %vm30 = vcmask 261120
    %v32 = vsel %vm30, %v21, 0
    %34 = vmatpush.msra.mxu0 0.0
    %35 = vmatpush.msra.mxu0 0.0
    %36 = vmatpush.msra.mxu0 0.0
    %37 = vmatpush.msra.mxu0 0.0
    %38 = vmatpush.msra.mxu0 0.0
    %39 = vmatpush.msra.mxu0 0.0
    %40 = vmatpush.msra.mxu0 0.0
    %41 = vmatpush.msra.mxu0 0.0
    %42 = vmatpush.msra.mxu0 0.0
    %43 = vmatpush.msra.mxu0 0.0
    %44 = vmatpush.msra.mxu0 0.0
    %45 = vmatpush.msra.mxu0 0.0
    %46 = vmatpush.msra.mxu0 %v25
    %47 = vmatpush.msra.mxu0 %v24
    %48 = vmatpush.msra.mxu0 %v23
    %49 = vmatpush.msra.mxu0 %v22
    %50 = vmatmul.f32.gmra.mxu0 %v32
    %v51 = vpop.f32.mrf.mxu0
    %v52 = vadd.f32 %v28, %v51
    %53 = vdwg.mxu0
    %v54 = vmax.f32 %v52, 0.0
    %v55 = vld [vmem:[%s3] sm:$0xff]
    %v56 = vld [vmem:[%s3 + $0x8] sm:$0xff]
    %v57 = vld [vmem:[%s3 + $0x10] sm:$0xff]
    %v58 = vld [vmem:[%s3 + $0x18] sm:$0xff]
    %v59 = vld [vmem:[%s3 + $0x20] sm:$0xff]
    %v60 = vld [vmem:[%s3 + $0x28] sm:$0xff]
    %v61 = vld [vmem:[%s3 + $0x30] sm:$0xff]
    %v62 = vld [vmem:[%s3 + $0x38] sm:$0xff]
    %v63 = vld [vmem:[%s3 + $0x40] sm:$0xff]
    %v64 = vld [vmem:[%s3 + $0x48] sm:$0xff]
    %v65 = vld [vmem:[%s3 + $0x50] sm:$0xff]
    %v66 = vld [vmem:[%s3 + $0x58] sm:$0xff]
    %v67 = vld [vmem:[%s3 + $0x60] sm:$0xff]
    %v68 = vld [vmem:[%s3 + $0x68] sm:$0xff]
    %v69 = vld [vmem:[%s3 + $0x70] sm:$0xff]
    %v70 = vld [vmem:[%s3 + $0x78] sm:$0xff]
    %v71 = vld [vmem:[%s4] sm:$0x1]
    %v73 = vperm.slane %v71, 0
    %75 = vmatpush.msra.mxu0 %v70
    %76 = vmatpush.msra.mxu0 %v69
    %77 = vmatpush.msra.mxu0 %v68
    %78 = vmatpush.msra.mxu0 %v67
    %79 = vmatpush.msra.mxu0 %v66
    %80 = vmatpush.msra.mxu0 %v65
    %81 = vmatpush.msra.mxu0 %v64
    %82 = vmatpush.msra.mxu0 %v63
    %83 = vmatpush.msra.mxu0 %v62
    %84 = vmatpush.msra.mxu0 %v61
    %85 = vmatpush.msra.mxu0 %v60
    %86 = vmatpush.msra.mxu0 %v59
    %87 = vmatpush.msra.mxu0 %v58
    %88 = vmatpush.msra.mxu0 %v57
    %89 = vmatpush.msra.mxu0 %v56
    %90 = vmatpush.msra.mxu0 %v55
    %91 = vmatmul.f32.gmra.mxu0 %v54
    %v92 = vpop.f32.mrf.mxu0
    %v93 = vadd.f32 %v73, %v92
    %94 = vdwg.mxu0
    %vm95 = vcmask 64512
    %96 = vst.msk [vmem:[#allocation2] sm:$0xff] %vm95, %v93
    // Predicated region
    $region22: #{qnetwork_forward.1} parent=1 // pred_check
      _
    $region23: #{qnetwork_forward.1} parent=1 // pred_check_branch
      %98 = sbr.rel (0) target = $region25
    $region24: #{qnetwork_forward.1} parent=1 // pred_region
      %100 = vsyncadd [#allocation3], 0
      %s102 = sshll.u32 [#allocation2], 4
      %s103 = int_to_ptr.vmem [resolvable:$true] %s102
      %s104 = sshll.u32 %s5, 4
      %s105 = int_to_ptr.hbm [resolvable:$true] %s104
      %107 = dma.vmem_to_hbm [thread:$0]  %s103, 128, %s105, [#allocation3]
    $region25: #{qnetwork_forward.1} parent=1 // pred_fallthru
      _
    // Predicated region
    $region26: #{qnetwork_forward.1} parent=1 // pred_check
      _
    $region27: #{qnetwork_forward.1} parent=1 // pred_check_branch
      %109 = sbr.rel (0) target = $region29
    $region28: #{qnetwork_forward.1} parent=1 // pred_region
      %111 = dma.done [#allocation3], 128
    $region29: #{qnetwork_forward.1} parent=1 // pred_fallthru
      _
    %112 = vsyncpa [#allocation3], 1

</llo_original>
